<compile_context>
chip_gen: v5e
topology: v5e:2x2
jax: 0.10.0
libtpu: 0.0.40
codegen_flags: <defaults>
</compile_context>

<pallas_src>
import math

import jax
import jax.numpy as jnp
from jax import lax
from jax.experimental import pallas as pl
from jax.experimental.pallas import tpu as pltpu


# ----------------------------- kernel helpers ------------------------------ #

def _gates_to_hc(gates, c, H):
    """LSTM gate math: 2 full-vreg transcendental passes + tanh(c')."""
    sg = jax.nn.sigmoid(gates)            # (B, 4H) — i, f, o lanes used
    tg = jnp.tanh(gates)                  # (B, 4H) — g lanes used
    i_g = sg[:, 0 * H:1 * H]
    f_g = sg[:, 1 * H:2 * H]
    g_g = tg[:, 2 * H:3 * H]
    o_g = sg[:, 3 * H:4 * H]
    c_new = f_g * c + i_g * g_g
    h_new = o_g * jnp.tanh(c_new)
    return h_new, c_new


def _log_softmax(logits):
    m = jnp.max(logits, axis=1, keepdims=True)
    lse = jnp.log(jnp.sum(jnp.exp(logits - m), axis=1, keepdims=True)) + m
    return logits - lse


# ------------------------- single-step kernel ------------------------------ #

def netz_step_kernel(x_ref, h0_ref, y0_ref,
                     w_o2h_ref, b_o2h_ref,
                     w_ihx_ref, bx_ref,
                     w_hh0_ref, w_hh1_ref,
                     w_fin_ref, b_fin_ref,
                     logp_ref, h_out_ref):
    H = h0_ref.shape[1]
    G = 4 * H

    # Carry-independent input projection for BOTH layers: one 8H-lane matmul.
    xp = (jnp.dot(x_ref[...], w_ihx_ref[...],
                  preferred_element_type=jnp.float32) + bx_ref[...])     # (B, 8H)

    # output_to_hidden: previous network output -> initial cell state c.
    c = (jnp.dot(y0_ref[...], w_o2h_ref[...],
                 preferred_element_type=jnp.float32) + b_o2h_ref[...])   # (B, H)
    h = h0_ref[...]

    # LSTM layer 0 (same `x` fed to every layer, as in the PyTorch module).
    gates0 = xp[:, :G] + jnp.dot(h, w_hh0_ref[...],
                                 preferred_element_type=jnp.float32)
    h, c = _gates_to_hc(gates0, c, H)
    # TODO(synk): nn.Dropout(p=0.8) on c between layers is train-only;
    # eval-mode identity here.
    gates1 = xp[:, G:] + jnp.dot(h, w_hh1_ref[...],
                                 preferred_element_type=jnp.float32)
    h, c = _gates_to_hc(gates1, c, H)

    logits = (jnp.dot(c, w_fin_ref[...],
                      preferred_element_type=jnp.float32) + b_fin_ref[...])
    logp_ref[...] = _log_softmax(logits)
    h_out_ref[...] = h


# ------------------------- multi-step decode kernel ------------------------ #

def netz_decode_kernel(x_seq_ref, h0_ref, y0_ref,
                       w_o2h_ref, b_o2h_ref,
                       w_ihx_ref, bx_ref,
                       w_hh0_ref, w_hh1_ref,
                       w_fin_ref, b_fin_ref,
                       logp_seq_ref, h_out_ref,
                       xproj_ref):
    """T decoder steps in one pallas_call; weights loaded once, VMEM-resident.

    Recurrence matches the module's decode-loop usage:
        logp, h = net(x[t], (logp, h))
    """
    T, B, I = x_seq_ref.shape
    H = h0_ref.shape[1]
    G = 4 * H

    # Hoisted, carry-independent input projections for both layers:
    # one (T*B, I) x (I, 8H) matmul + fused gate biases, stored to VMEM scratch.
    x_flat = x_seq_ref[...].reshape(T * B, I)
    xp_all = (jnp.dot(x_flat, w_ihx_ref[...],
                      preferred_element_type=jnp.float32) + bx_ref[...])
    xproj_ref[...] = xp_all.reshape(T, B, 2 * G)

    def step(t, carry):
        y, h = carry
        xp_t = xproj_ref[t]                                   # (B, 8H)

        # Carried dependency chain per step: o2h -> hh0 -> hh1 -> fin.
        c = (jnp.dot(y, w_o2h_ref[...],
                     preferred_element_type=jnp.float32) + b_o2h_ref[...])
        gates0 = xp_t[:, :G] + jnp.dot(h, w_hh0_ref[...],
                                       preferred_element_type=jnp.float32)
        h, c = _gates_to_hc(gates0, c, H)
        gates1 = xp_t[:, G:] + jnp.dot(h, w_hh1_ref[...],
                                       preferred_element_type=jnp.float32)
        h, c = _gates_to_hc(gates1, c, H)

        logits = (jnp.dot(c, w_fin_ref[...],
                          preferred_element_type=jnp.float32) + b_fin_ref[...])
        logp = _log_softmax(logits)
        logp_seq_ref[t] = logp                                # (B, O)
        return (logp, h)

    # T is a static Python int -> fully unrolled for LLO scheduling window.
    _, h_fin = lax.fori_loop(0, T, step, (y0_ref[...], h0_ref[...]),
                             unroll=True)
    h_out_ref[...] = h_fin


# ------------------------------- wrappers ----------------------------------- #

_VMEM = pl.BlockSpec(memory_space=pltpu.MemorySpace.VMEM)


def _param_args(p):
    return (p["w_o2h"], p["b_o2h"], p["w_ihx"], p["bx"],
            p["w_hh0"], p["w_hh1"], p["w_fin"], p["b_fin"])


def _cost(T, B, I, H, O):
    """Rough CostEstimate so XLA schedules around the tiny custom call sanely."""
    flops = 2 * T * B * I * (8 * H)                   # hoisted x-projection
    flops += T * 2 * B * O * H                        # output_to_hidden
    flops += T * 2 * (2 * B * H * (4 * H))            # recurrent gate matmuls
    flops += T * 2 * B * H * O                        # final layer
    flops += T * B * (12 * H + 4 * O)                 # elementwise (approx)
    transcendentals = T * B * (2 * (8 * H + H) + O + 1)
    bytes_accessed = 4 * (T * B * I + B * H + B * O          # inputs
                          + T * B * O + B * H                # outputs
                          + O * H + H + I * 8 * H + 8 * H    # weights
                          + 2 * H * 4 * H + H * O + O)
    return pl.CostEstimate(flops=int(flops),
                           transcendentals=int(transcendentals),
                           bytes_accessed=int(bytes_accessed))


def netz_forward(x, h0, y0, params):
    """Single step: exact analogue of Netz.forward(input, (output, hidden))."""
    B, I = x.shape
    H, O = h0.shape[1], y0.shape[1]
    ins = (x, h0, y0) + _param_args(params)
    logp, h_out = pl.pallas_call(
        netz_step_kernel,
        out_shape=(jax.ShapeDtypeStruct((B, O), jnp.float32),
                   jax.ShapeDtypeStruct((B, H), jnp.float32)),
        in_specs=[_VMEM] * len(ins),
        out_specs=(_VMEM, _VMEM),
        cost_estimate=_cost(1, B, I, H, O),
    )(*ins)
    return logp, h_out


def netz_decode(x_seq, h0, y0, params):
    """T decoder steps fused into one kernel launch (the hot path)."""
    T, B, I = x_seq.shape
    H, O = h0.shape[1], y0.shape[1]
    ins = (x_seq, h0, y0) + _param_args(params)
    logp_seq, h_fin = pl.pallas_call(
        netz_decode_kernel,
        out_shape=(jax.ShapeDtypeStruct((T, B, O), jnp.float32),
                   jax.ShapeDtypeStruct((B, H), jnp.float32)),
        in_specs=[_VMEM] * len(ins),
        out_specs=(_VMEM, _VMEM),
        scratch_shapes=[pltpu.VMEM((T, B, 8 * H), jnp.float32)],
        cost_estimate=_cost(T, B, I, H, O),
    )(*ins)
    return logp_seq, h_fin


# --------------------- deterministic parameter setup ------------------------ #

def _uniform(key, shape, bound):
    return jax.random.uniform(key, shape, jnp.float32, -bound, bound)


def init_params(key, I, H, O):
    """PyTorch-style init, then pack into the fused kernel layout.

    Kernel layout:
      w_o2h (O, H), b_o2h (1, H)
      w_ihx (I, 8H)  = [w_ih0.T | w_ih1.T]   (gate column order i, f, g, o)
      bx    (1, 8H)  = [b_ih0+b_hh0 | b_ih1+b_hh1]
      w_hh0 (H, 4H), w_hh1 (H, 4H)
      w_fin (H, O), b_fin (1, O)
    """
    ks = jax.random.split(key, 12)
    bH = 1.0 / math.sqrt(H)
    bO = 1.0 / math.sqrt(O)

    # output_to_hidden: Linear(O -> H), PyTorch weight (H, O)
    w_o2h = _uniform(ks[0], (H, O), bO)
    b_o2h = _uniform(ks[1], (H,), bO)
    # final_layer: Linear(H -> O), PyTorch weight (O, H)
    w_fin = _uniform(ks[2], (O, H), bH)
    b_fin = _uniform(ks[3], (O,), bH)
    # LSTMCell layer 0
    w_ih0 = _uniform(ks[4], (4 * H, I), bH)
    w_hh0 = _uniform(ks[5], (4 * H, H), bH)
    b_ih0 = _uniform(ks[6], (4 * H,), bH)
    b_hh0 = _uniform(ks[7], (4 * H,), bH)
    # LSTMCell layer 1
    w_ih1 = _uniform(ks[8], (4 * H, I), bH)
    w_hh1 = _uniform(ks[9], (4 * H, H), bH)
    b_ih1 = _uniform(ks[10], (4 * H,), bH)
    b_hh1 = _uniform(ks[11], (4 * H,), bH)

    w_ihx = jnp.concatenate([w_ih0.T, w_ih1.T], axis=1)                # (I, 8H)
    bx = jnp.concatenate([b_ih0 + b_hh0, b_ih1 + b_hh1])[None, :]      # (1, 8H)
    return {
        "w_o2h": w_o2h.T, "b_o2h": b_o2h[None, :],
        "w_ihx": w_ihx, "bx": bx,
        "w_hh0": w_hh0.T, "w_hh1": w_hh1.T,
        "w_fin": w_fin.T, "b_fin": b_fin[None, :],
    }


# ------------------------- pure-JAX references ------------------------------ #

def reference_step(x, h0, y0, p):
    H = h0.shape[1]
    G = 4 * H
    xp = jnp.dot(x, p["w_ihx"]) + p["bx"]
    c = jnp.dot(y0, p["w_o2h"]) + p["b_o2h"]
    h = h0
    for w_hh, lo in ((p["w_hh0"], 0), (p["w_hh1"], G)):
        gates = xp[:, lo:lo + G] + jnp.dot(h, w_hh)
        i_g = jax.nn.sigmoid(gates[:, 0 * H:1 * H])
        f_g = jax.nn.sigmoid(gates[:, 1 * H:2 * H])
        g_g = jnp.tanh(gates[:, 2 * H:3 * H])
        o_g = jax.nn.sigmoid(gates[:, 3 * H:4 * H])
        c = f_g * c + i_g * g_g
        h = o_g * jnp.tanh(c)
    logits = jnp.dot(c, p["w_fin"]) + p["b_fin"]
    logp = logits - jax.scipy.special.logsumexp(logits, axis=1, keepdims=True)
    return logp, h


def reference_decode(x_seq, h0, y0, p):
    def step(carry, x_t):
        y, h = carry
        logp, h = reference_step(x_t, h, y, p)
        return (logp, h), logp
    (_, h_fin), logps = lax.scan(step, (y0, h0), x_seq)
    return logps, h_fin


# --------------------------------- main ------------------------------------- #

if __name__ == "__main__":
    B, I, H, O, T = 8, 16, 32, 24, 12   # batch, input, hidden, output, steps

    key = jax.random.PRNGKey(0)
    k_x, k_seq, k_p = jax.random.split(key, 3)
    x = jax.random.normal(k_x, (B, I), jnp.float32)
    x_seq = jax.random.normal(k_seq, (T, B, I), jnp.float32)
    # initHidden(): zero initial (output, hidden), broadcast to batch B.
    y0 = jnp.zeros((B, O), jnp.float32)
    h0 = jnp.zeros((B, H), jnp.float32)

    params = init_params(k_p, I, H, O)

    # --- single step (module-exact forward) ---
    logp, h_out = netz_forward(x, h0, y0, params)
    jax.block_until_ready((logp, h_out))
    ref_logp, ref_h = reference_step(x, h0, y0, params)
    assert jnp.allclose(logp, ref_logp, atol=1e-5, rtol=1e-5), "logp mismatch"
    assert jnp.allclose(h_out, ref_h, atol=1e-5, rtol=1e-5), "hidden mismatch"
    assert jnp.allclose(jnp.exp(logp).sum(axis=1), 1.0, atol=1e-5)

    # --- fused T-step decode (one pallas_call, weights VMEM-resident) ---
    logp_seq, h_fin = netz_decode(x_seq, h0, y0, params)
    jax.block_until_ready((logp_seq, h_fin))
    ref_seq, ref_hf = reference_decode(x_seq, h0, y0, params)
    assert jnp.allclose(logp_seq, ref_seq, atol=1e-4, rtol=1e-4), "seq logp mismatch"
    assert jnp.allclose(h_fin, ref_hf, atol=1e-4, rtol=1e-4), "seq hidden mismatch"
    assert jnp.allclose(jnp.exp(logp_seq).sum(axis=-1), 1.0, atol=1e-4)

    print("KERNEL_OK")
</pallas_src>

<mosaic_0001>
module attributes {stable_mosaic.version = 11 : i64} {
  func.func @netz_step_kernel(%arg0: memref<8x16xf32, #tpu.memory_space<vmem>>, %arg1: memref<8x32xf32, #tpu.memory_space<vmem>>, %arg2: memref<8x24xf32, #tpu.memory_space<vmem>>, %arg3: memref<24x32xf32, #tpu.memory_space<vmem>>, %arg4: memref<1x32xf32, #tpu.memory_space<vmem>>, %arg5: memref<16x256xf32, #tpu.memory_space<vmem>>, %arg6: memref<1x256xf32, #tpu.memory_space<vmem>>, %arg7: memref<32x128xf32, #tpu.memory_space<vmem>>, %arg8: memref<32x128xf32, #tpu.memory_space<vmem>>, %arg9: memref<32x24xf32, #tpu.memory_space<vmem>>, %arg10: memref<1x24xf32, #tpu.memory_space<vmem>>, %arg11: memref<8x24xf32, #tpu.memory_space<vmem>>, %arg12: memref<8x32xf32, #tpu.memory_space<vmem>>) attributes {dimension_semantics = [], scalar_prefetch = 0 : i64, scratch_operands = 0 : i64, tpu.core_type = #tpu.core_type<tc>} {
    %c0 = arith.constant 0 : index
    %c0_0 = arith.constant 0 : index
    %0 = vector.load %arg0[%c0, %c0_0] : memref<8x16xf32, #tpu.memory_space<vmem>>, vector<8x16xf32>
    %c0_1 = arith.constant 0 : index
    %c0_2 = arith.constant 0 : index
    %1 = vector.load %arg5[%c0_1, %c0_2] : memref<16x256xf32, #tpu.memory_space<vmem>>, vector<16x256xf32>
    %cst = arith.constant dense<0.000000e+00> : vector<8x256xf32>
    %2 = tpu.matmul %0, %1, %cst {dimension_numbers = #tpu.dot_dimension_numbers<[1], [0], [0], [1], [0, 0, 1, 1], [], []>} : vector<8x16xf32>, vector<16x256xf32>, vector<8x256xf32> -> vector<8x256xf32>
    %c0_3 = arith.constant 0 : index
    %c0_4 = arith.constant 0 : index
    %3 = vector.load %arg6[%c0_3, %c0_4] : memref<1x256xf32, #tpu.memory_space<vmem>>, vector<1x256xf32>
    %4 = vector.broadcast %3 : vector<1x256xf32> to vector<8x256xf32>
    %5 = arith.addf %2, %4 : vector<8x256xf32>
    %c0_5 = arith.constant 0 : index
    %c0_6 = arith.constant 0 : index
    %6 = vector.load %arg2[%c0_5, %c0_6] : memref<8x24xf32, #tpu.memory_space<vmem>>, vector<8x24xf32>
    %c0_7 = arith.constant 0 : index
    %c0_8 = arith.constant 0 : index
    %7 = vector.load %arg3[%c0_7, %c0_8] : memref<24x32xf32, #tpu.memory_space<vmem>>, vector<24x32xf32>
    %cst_9 = arith.constant dense<0.000000e+00> : vector<8x32xf32>
    %8 = tpu.matmul %6, %7, %cst_9 {dimension_numbers = #tpu.dot_dimension_numbers<[1], [0], [0], [1], [0, 0, 1, 1], [], []>} : vector<8x24xf32>, vector<24x32xf32>, vector<8x32xf32> -> vector<8x32xf32>
    %c0_10 = arith.constant 0 : index
    %c0_11 = arith.constant 0 : index
    %9 = vector.load %arg4[%c0_10, %c0_11] : memref<1x32xf32, #tpu.memory_space<vmem>>, vector<1x32xf32>
    %10 = vector.broadcast %9 : vector<1x32xf32> to vector<8x32xf32>
    %11 = arith.addf %8, %10 : vector<8x32xf32>
    %c0_12 = arith.constant 0 : index
    %c0_13 = arith.constant 0 : index
    %12 = vector.load %arg1[%c0_12, %c0_13] : memref<8x32xf32, #tpu.memory_space<vmem>>, vector<8x32xf32>
    %13 = vector.extract_strided_slice %5 {offsets = [0, 0], sizes = [8, 128], strides = [1, 1]} : vector<8x256xf32> to vector<8x128xf32>
    %c0_14 = arith.constant 0 : index
    %c0_15 = arith.constant 0 : index
    %14 = vector.load %arg7[%c0_14, %c0_15] : memref<32x128xf32, #tpu.memory_space<vmem>>, vector<32x128xf32>
    %cst_16 = arith.constant dense<0.000000e+00> : vector<8x128xf32>
    %15 = tpu.matmul %12, %14, %cst_16 {dimension_numbers = #tpu.dot_dimension_numbers<[1], [0], [0], [1], [0, 0, 1, 1], [], []>} : vector<8x32xf32>, vector<32x128xf32>, vector<8x128xf32> -> vector<8x128xf32>
    %16 = arith.addf %13, %15 : vector<8x128xf32>
    %17 = arith.negf %16 : vector<8x128xf32>
    %18 = math.exp %17 : vector<8x128xf32>
    %cst_17 = arith.constant 1.000000e+00 : f32
    %19 = vector.broadcast %cst_17 : f32 to vector<8x128xf32>
    %20 = arith.addf %19, %18 : vector<8x128xf32>
    %21 = arith.divf %19, %20 : vector<8x128xf32>
    %22 = math.tanh %16 : vector<8x128xf32>
    %23 = vector.extract_strided_slice %21 {offsets = [0, 0], sizes = [8, 32], strides = [1, 1]} : vector<8x128xf32> to vector<8x32xf32>
    %24 = vector.extract_strided_slice %21 {offsets = [0, 32], sizes = [8, 32], strides = [1, 1]} : vector<8x128xf32> to vector<8x32xf32>
    %25 = vector.extract_strided_slice %22 {offsets = [0, 64], sizes = [8, 32], strides = [1, 1]} : vector<8x128xf32> to vector<8x32xf32>
    %26 = vector.extract_strided_slice %21 {offsets = [0, 96], sizes = [8, 32], strides = [1, 1]} : vector<8x128xf32> to vector<8x32xf32>
    %27 = arith.mulf %24, %11 : vector<8x32xf32>
    %28 = arith.mulf %23, %25 : vector<8x32xf32>
    %29 = arith.addf %27, %28 : vector<8x32xf32>
    %30 = math.tanh %29 : vector<8x32xf32>
    %31 = arith.mulf %26, %30 : vector<8x32xf32>
    %32 = vector.extract_strided_slice %5 {offsets = [0, 128], sizes = [8, 128], strides = [1, 1]} : vector<8x256xf32> to vector<8x128xf32>
    %c0_18 = arith.constant 0 : index
    %c0_19 = arith.constant 0 : index
    %33 = vector.load %arg8[%c0_18, %c0_19] : memref<32x128xf32, #tpu.memory_space<vmem>>, vector<32x128xf32>
    %cst_20 = arith.constant dense<0.000000e+00> : vector<8x128xf32>
    %34 = tpu.matmul %31, %33, %cst_20 {dimension_numbers = #tpu.dot_dimension_numbers<[1], [0], [0], [1], [0, 0, 1, 1], [], []>} : vector<8x32xf32>, vector<32x128xf32>, vector<8x128xf32> -> vector<8x128xf32>
    %35 = arith.addf %32, %34 : vector<8x128xf32>
    %36 = arith.negf %35 : vector<8x128xf32>
    %37 = math.exp %36 : vector<8x128xf32>
    %cst_21 = arith.constant 1.000000e+00 : f32
    %38 = vector.broadcast %cst_21 : f32 to vector<8x128xf32>
    %39 = arith.addf %38, %37 : vector<8x128xf32>
    %40 = arith.divf %38, %39 : vector<8x128xf32>
    %41 = math.tanh %35 : vector<8x128xf32>
    %42 = vector.extract_strided_slice %40 {offsets = [0, 0], sizes = [8, 32], strides = [1, 1]} : vector<8x128xf32> to vector<8x32xf32>
    %43 = vector.extract_strided_slice %40 {offsets = [0, 32], sizes = [8, 32], strides = [1, 1]} : vector<8x128xf32> to vector<8x32xf32>
    %44 = vector.extract_strided_slice %41 {offsets = [0, 64], sizes = [8, 32], strides = [1, 1]} : vector<8x128xf32> to vector<8x32xf32>
    %45 = vector.extract_strided_slice %40 {offsets = [0, 96], sizes = [8, 32], strides = [1, 1]} : vector<8x128xf32> to vector<8x32xf32>
    %46 = arith.mulf %43, %29 : vector<8x32xf32>
    %47 = arith.mulf %42, %44 : vector<8x32xf32>
    %48 = arith.addf %46, %47 : vector<8x32xf32>
    %49 = math.tanh %48 : vector<8x32xf32>
    %50 = arith.mulf %45, %49 : vector<8x32xf32>
    %c0_22 = arith.constant 0 : index
    %c0_23 = arith.constant 0 : index
    %51 = vector.load %arg9[%c0_22, %c0_23] : memref<32x24xf32, #tpu.memory_space<vmem>>, vector<32x24xf32>
    %cst_24 = arith.constant dense<0.000000e+00> : vector<8x24xf32>
    %52 = tpu.matmul %48, %51, %cst_24 {dimension_numbers = #tpu.dot_dimension_numbers<[1], [0], [0], [1], [0, 0, 1, 1], [], []>} : vector<8x32xf32>, vector<32x24xf32>, vector<8x24xf32> -> vector<8x24xf32>
    %c0_25 = arith.constant 0 : index
    %c0_26 = arith.constant 0 : index
    %53 = vector.load %arg10[%c0_25, %c0_26] : memref<1x24xf32, #tpu.memory_space<vmem>>, vector<1x24xf32>
    %54 = vector.broadcast %53 : vector<1x24xf32> to vector<8x24xf32>
    %55 = arith.addf %52, %54 : vector<8x24xf32>
    %cst_27 = arith.constant dense<0xFF800000> : vector<8xf32>
    %56 = vector.multi_reduction <maximumf>, %55, %cst_27 [1] : vector<8x24xf32> to vector<8xf32>
    %57 = vector.shape_cast %56 : vector<8xf32> to vector<8x1xf32>
    %58 = vector.broadcast %57 : vector<8x1xf32> to vector<8x24xf32>
    %59 = arith.subf %55, %58 : vector<8x24xf32>
    %60 = math.exp %59 : vector<8x24xf32>
    %cst_28 = arith.constant dense<0.000000e+00> : vector<8xf32>
    %61 = vector.multi_reduction <add>, %60, %cst_28 [1] : vector<8x24xf32> to vector<8xf32>
    %62 = vector.shape_cast %61 : vector<8xf32> to vector<8x1xf32>
    %63 = math.log %62 : vector<8x1xf32>
    %64 = arith.addf %63, %57 : vector<8x1xf32>
    %65 = vector.broadcast %64 : vector<8x1xf32> to vector<8x24xf32>
    %66 = arith.subf %55, %65 : vector<8x24xf32>
    %c0_29 = arith.constant 0 : index
    %c0_30 = arith.constant 0 : index
    %67 = vector.load %arg11[%c0_29, %c0_30] : memref<8x24xf32, #tpu.memory_space<vmem>>, vector<8x24xf32>
    tpu.vector_store %arg11[%c0_29, %c0_30], %66 {strides = array<i32>} : memref<8x24xf32, #tpu.memory_space<vmem>>, vector<8x24xf32>,
    %c0_31 = arith.constant 0 : index
    %c0_32 = arith.constant 0 : index
    %68 = vector.load %arg12[%c0_31, %c0_32] : memref<8x32xf32, #tpu.memory_space<vmem>>, vector<8x32xf32>
    tpu.vector_store %arg12[%c0_31, %c0_32], %50 {strides = array<i32>} : memref<8x32xf32, #tpu.memory_space<vmem>>, vector<8x32xf32>,
    return
  }
}

</mosaic_0001>

<llo_original>
// kernel: tpu_custom_call.1
$region0: #{tpu_custom_call.1}
  #allocation0 [shape = 'u32[]', space=smem, size = 0x4, offset = 0x4, fixed_abs, tag = 'smem constant byte address 0x4 - core index']
  #allocation1 [shape = 'u32[72,128]{1,0:T(1,128)}', space=vmem, size = 0x9000, scoped, tag = 'internal scratch']
  %s0 = inlined_call_operand.hbm [shape: f32[8,16], index: 0, kind: input, shape index: {}]
  %s1 = inlined_call_operand.hbm [shape: f32[8,32], index: 1, kind: input, shape index: {}]
  %s2 = inlined_call_operand.hbm [shape: f32[8,24], index: 2, kind: input, shape index: {}]
  %s3 = inlined_call_operand.vmem [shape: f32[24,32], index: 3, kind: input, shape index: {}]
  %s4 = inlined_call_operand.vmem [shape: f32[1,32], index: 4, kind: input, shape index: {}]
  %s5 = inlined_call_operand.vmem [shape: f32[16,256], index: 5, kind: input, shape index: {}]
  %s6 = inlined_call_operand.vmem [shape: f32[1,256], index: 6, kind: input, shape index: {}]
  %s7 = inlined_call_operand.hbm [shape: f32[32,128], index: 7, kind: input, shape index: {}]
  %s8 = inlined_call_operand.hbm [shape: f32[32,128], index: 8, kind: input, shape index: {}]
  %s9 = inlined_call_operand.vmem [shape: f32[32,24], index: 9, kind: input, shape index: {}]
  %s10 = inlined_call_operand.vmem [shape: f32[1,24], index: 10, kind: input, shape index: {}]
  %s11 = inlined_call_operand.hbm [shape: f32[8,24], index: 11, kind: output, shape index: {0}]
  %s12 = inlined_call_operand.hbm [shape: f32[8,32], index: 12, kind: output, shape index: {1}]
  %13 = xla_tuple %s11, %s12
  %s14 = sld [smem:[#allocation0]]
  $region82: #{tpu_custom_call.1} parent=0
    _
  %s16 = ssub.s32 1, %s14
  %s17 = scalar_select 0, %s16, %s14
  $region1: #{tpu_custom_call.1} parent=0
    #allocation2 [shape = 'u8[4096]{0}', space=vmem, size = 0x1000, scoped, tag = 'input window, operand 0, single buffered']
    #allocation3 [shape = 's32[1]{0}', space=sflag, size = 0x4, scoped, tag = 'scoped memory for tpu_custom_call.1']
    #allocation4 [shape = 's32[1]{0}', space=sflag, size = 0x4, scoped, tag = 'scoped memory for tpu_custom_call.1']
    #allocation5 [shape = 'u8[4096]{0}', space=vmem, size = 0x1000, scoped, tag = 'input window, operand 1, single buffered']
    #allocation6 [shape = 's32[1]{0}', space=sflag, size = 0x4, scoped, tag = 'scoped memory for tpu_custom_call.1']
    #allocation7 [shape = 'u8[4096]{0}', space=vmem, size = 0x1000, scoped, tag = 'input window, operand 2, single buffered']
    #allocation8 [shape = 'u8[16384]{0}', space=vmem, size = 0x4000, scoped, tag = 'input window, operand 7, single buffered']
    #allocation9 [shape = 's32[1]{0}', space=sflag, size = 0x4, scoped, tag = 'scoped memory for tpu_custom_call.1']
    #allocation10 [shape = 'u8[16384]{0}', space=vmem, size = 0x4000, scoped, tag = 'input window, operand 8, single buffered']
    #allocation11 [shape = 'u8[4096]{0}', space=vmem, size = 0x1000, scoped, tag = 'output window, operand 0, single buffered']
    #allocation12 [shape = 'u8[4096]{0}', space=vmem, size = 0x1000, scoped, tag = 'output window, operand 1, single buffered']
    #allocation13 [shape = 's32[1]{0}', space=sflag, size = 0x4, scoped, tag = 'scoped memory for tpu_custom_call.1']
    %18 = vsyncpa [#allocation3], 0
    %19 = vsyncpa [#allocation6], 0
    %20 = vsyncpa [#allocation9], 0
    %21 = vsyncpa [#allocation4], 0
    %22 = vsyncpa [#allocation13], 0
    // Predicated region
    $region2: #{tpu_custom_call.1} parent=1 // pred_check
      _
    $region3: #{tpu_custom_call.1} parent=1 // pred_check_branch
      %24 = sbr.rel (0) target = $region5
    $region4: #{tpu_custom_call.1} parent=1 // pred_region
      %26 = vsyncadd [#allocation3], 0
      %s28 = sshll.u32 %s0, 4
      %s29 = int_to_ptr.hbm [resolvable:$true] %s28
      %s30 = sshll.u32 [#allocation2], 4
      %s31 = int_to_ptr.vmem [resolvable:$true] %s30
      %33 = dma.hbm_to_vmem [thread:$0]  %s29, 128, %s31, [#allocation3]
    $region5: #{tpu_custom_call.1} parent=1 // pred_fallthru
      _
    // Predicated region
    $region6: #{tpu_custom_call.1} parent=1 // pred_check
      _
    $region7: #{tpu_custom_call.1} parent=1 // pred_check_branch
      %35 = sbr.rel (0) target = $region9
    $region8: #{tpu_custom_call.1} parent=1 // pred_region
      %37 = vsyncadd [#allocation6], 0
      %s39 = sshll.u32 %s1, 4
      %s40 = int_to_ptr.hbm [resolvable:$true] %s39
      %s41 = sshll.u32 [#allocation5], 4
      %s42 = int_to_ptr.vmem [resolvable:$true] %s41
      %44 = dma.hbm_to_vmem [thread:$0]  %s40, 128, %s42, [#allocation6]
    $region9: #{tpu_custom_call.1} parent=1 // pred_fallthru
      _
    // Predicated region
    $region10: #{tpu_custom_call.1} parent=1 // pred_check
      _
    $region11: #{tpu_custom_call.1} parent=1 // pred_check_branch
      %46 = sbr.rel (0) target = $region13
    $region12: #{tpu_custom_call.1} parent=1 // pred_region
      %48 = vsyncadd [#allocation6], 0
      %s50 = sshll.u32 %s2, 4
      %s51 = int_to_ptr.hbm [resolvable:$true] %s50
      %s52 = sshll.u32 [#allocation7], 4
      %s53 = int_to_ptr.vmem [resolvable:$true] %s52
      %55 = dma.hbm_to_vmem [thread:$0]  %s51, 128, %s53, [#allocation6]
    $region13: #{tpu_custom_call.1} parent=1 // pred_fallthru
      _
    // Predicated region
    $region14: #{tpu_custom_call.1} parent=1 // pred_check
      _
    $region15: #{tpu_custom_call.1} parent=1 // pred_check_branch
      %57 = sbr.rel (0) target = $region17
    $region16: #{tpu_custom_call.1} parent=1 // pred_region
      _
    $region17: #{tpu_custom_call.1} parent=1 // pred_fallthru
      _
    // Predicated region
    $region18: #{tpu_custom_call.1} parent=1 // pred_check
      _
    $region19: #{tpu_custom_call.1} parent=1 // pred_check_branch
      %59 = sbr.rel (0) target = $region21
    $region20: #{tpu_custom_call.1} parent=1 // pred_region
      _
    $region21: #{tpu_custom_call.1} parent=1 // pred_fallthru
      _
    // Predicated region
    $region22: #{tpu_custom_call.1} parent=1 // pred_check
      _
    $region23: #{tpu_custom_call.1} parent=1 // pred_check_branch
      %61 = sbr.rel (0) target = $region25
    $region24: #{tpu_custom_call.1} parent=1 // pred_region
      _
    $region25: #{tpu_custom_call.1} parent=1 // pred_fallthru
      _
    // Predicated region
    $region26: #{tpu_custom_call.1} parent=1 // pred_check
      _
    $region27: #{tpu_custom_call.1} parent=1 // pred_check_branch
      %63 = sbr.rel (0) target = $region29
    $region28: #{tpu_custom_call.1} parent=1 // pred_region
      _
    $region29: #{tpu_custom_call.1} parent=1 // pred_fallthru
      _
    // Predicated region
    $region30: #{tpu_custom_call.1} parent=1 // pred_check
      _
    $region31: #{tpu_custom_call.1} parent=1 // pred_check_branch
      %65 = sbr.rel (0) target = $region33
    $region32: #{tpu_custom_call.1} parent=1 // pred_region
      %67 = vsyncadd [#allocation9], 0
      %s68 = sshll.u32 %s7, 4
      %s69 = int_to_ptr.hbm [resolvable:$true] %s68
      %s70 = sshll.u32 [#allocation8], 4
      %s71 = int_to_ptr.vmem [resolvable:$true] %s70
      %76 = dma.hbm_to_vmem [thread:$0]  %s69, 512, %s71, [#allocation9], 128, 128, 8
    $region33: #{tpu_custom_call.1} parent=1 // pred_fallthru
      _
    // Predicated region
    $region34: #{tpu_custom_call.1} parent=1 // pred_check
      _
    $region35: #{tpu_custom_call.1} parent=1 // pred_check_branch
      %78 = sbr.rel (0) target = $region37
    $region36: #{tpu_custom_call.1} parent=1 // pred_region
      %80 = vsyncadd [#allocation9], 0
      %s81 = sshll.u32 %s8, 4
      %s82 = int_to_ptr.hbm [resolvable:$true] %s81
      %s83 = sshll.u32 [#allocation10], 4
      %s84 = int_to_ptr.vmem [resolvable:$true] %s83
      %89 = dma.hbm_to_vmem [thread:$0]  %s82, 512, %s84, [#allocation9], 128, 128, 8
    $region37: #{tpu_custom_call.1} parent=1 // pred_fallthru
      _
    // Predicated region
    $region38: #{tpu_custom_call.1} parent=1 // pred_check
      _
    $region39: #{tpu_custom_call.1} parent=1 // pred_check_branch
      %91 = sbr.rel (0) target = $region41
    $region40: #{tpu_custom_call.1} parent=1 // pred_region
      _
    $region41: #{tpu_custom_call.1} parent=1 // pred_fallthru
      _
    // Predicated region
    $region42: #{tpu_custom_call.1} parent=1 // pred_check
      _
    $region43: #{tpu_custom_call.1} parent=1 // pred_check_branch
      %93 = sbr.rel (0) target = $region45
    $region44: #{tpu_custom_call.1} parent=1 // pred_region
      _
    $region45: #{tpu_custom_call.1} parent=1 // pred_fallthru
      _
    // Predicated region
    $region46: #{tpu_custom_call.1} parent=1 // pred_check
      _
    $region47: #{tpu_custom_call.1} parent=1 // pred_check_branch
      %95 = sbr.rel (0) target = $region49
    $region48: #{tpu_custom_call.1} parent=1 // pred_region
      %97 = dma.done [#allocation3], 128
    $region49: #{tpu_custom_call.1} parent=1 // pred_fallthru
      _
    // Predicated region
    $region50: #{tpu_custom_call.1} parent=1 // pred_check
      _
    $region51: #{tpu_custom_call.1} parent=1 // pred_check_branch
      %99 = sbr.rel (0) target = $region53
    $region52: #{tpu_custom_call.1} parent=1 // pred_region
      %101 = dma.done [#allocation6], 128
    $region53: #{tpu_custom_call.1} parent=1 // pred_fallthru
      _
    // Predicated region
    $region54: #{tpu_custom_call.1} parent=1 // pred_check
      _
    $region55: #{tpu_custom_call.1} parent=1 // pred_check_branch
      %103 = sbr.rel (0) target = $region57
    $region56: #{tpu_custom_call.1} parent=1 // pred_region
      %105 = dma.done [#allocation6], 128
    $region57: #{tpu_custom_call.1} parent=1 // pred_fallthru
      _
    // Predicated region
    $region58: #{tpu_custom_call.1} parent=1 // pred_check
      _
    $region59: #{tpu_custom_call.1} parent=1 // pred_check_branch
      %107 = sbr.rel (0) target = $region61
    $region60: #{tpu_custom_call.1} parent=1 // pred_region
      %109 = dma.done [#allocation9], 512
    $region61: #{tpu_custom_call.1} parent=1 // pred_fallthru
      _
    // Predicated region
    $region62: #{tpu_custom_call.1} parent=1 // pred_check
      _
    $region63: #{tpu_custom_call.1} parent=1 // pred_check_branch
      %111 = sbr.rel (0) target = $region65
    $region64: #{tpu_custom_call.1} parent=1 // pred_region
      %113 = dma.done [#allocation9], 512
    $region65: #{tpu_custom_call.1} parent=1 // pred_fallthru
      _
    %v114 = vld [vmem:[#allocation2] sm:$0xff]
    %v115 = vld [vmem:[%s5] sm:$0xff]
    %v116 = vld [vmem:[%s5 + $0x8] sm:$0xff]
    %v117 = vld [vmem:[%s5 + $0x10] sm:$0xff]
    %v118 = vld [vmem:[%s5 + $0x18] sm:$0xff]
    %v119 = vld [vmem:[%s6] sm:$0x3]
    %v121 = vperm.slane %v119, 0
    %v122 = vperm.slane %v119, 1
    %vm125 = vcmask 130048
    %v127 = vsel %vm125, %v114, 0
    %129 = vmatpush.msra.mxu0 0.0
    %130 = vmatpush.msra.mxu0 0.0
    %131 = vmatpush.msra.mxu0 0.0
    %132 = vmatpush.msra.mxu0 0.0
    %133 = vmatpush.msra.mxu0 0.0
    %134 = vmatpush.msra.mxu0 0.0
    %135 = vmatpush.msra.mxu0 0.0
    %136 = vmatpush.msra.mxu0 0.0
    %137 = vmatpush.msra.mxu0 0.0
    %138 = vmatpush.msra.mxu0 0.0
    %139 = vmatpush.msra.mxu0 0.0
    %140 = vmatpush.msra.mxu0 0.0
    %141 = vmatpush.msra.mxu0 0.0
    %142 = vmatpush.msra.mxu0 0.0
    %143 = vmatpush.msra.mxu0 %v117
    %144 = vmatpush.msra.mxu0 %v115
    %145 = vmatmul.f32.gmra.mxu0 %v127
    %v146 = vpop.f32.mrf.mxu0
    %v147 = vadd.f32 %v121, %v146
    %148 = vdwg.mxu0
    %149 = vmatpush.msra.mxu0 0.0
    %150 = vmatpush.msra.mxu0 0.0
    %151 = vmatpush.msra.mxu0 0.0
    %152 = vmatpush.msra.mxu0 0.0
    %153 = vmatpush.msra.mxu0 0.0
    %154 = vmatpush.msra.mxu0 0.0
    %155 = vmatpush.msra.mxu0 0.0
    %156 = vmatpush.msra.mxu0 0.0
    %157 = vmatpush.msra.mxu0 0.0
    %158 = vmatpush.msra.mxu0 0.0
    %159 = vmatpush.msra.mxu0 0.0
    %160 = vmatpush.msra.mxu0 0.0
    %161 = vmatpush.msra.mxu0 0.0
    %162 = vmatpush.msra.mxu0 0.0
    %163 = vmatpush.msra.mxu0 %v118
    %164 = vmatpush.msra.mxu0 %v116
    %165 = vmatmul.f32.gmra.mxu0 %v127
    %v166 = vpop.f32.mrf.mxu0
    %v167 = vadd.f32 %v122, %v166
    %168 = vdwg.mxu0
    %v169 = vld [vmem:[#allocation7] sm:$0xff]
    %v170 = vld [vmem:[%s3] sm:$0xff]
    %v171 = vld [vmem:[%s3 + $0x8] sm:$0xff]
    %v172 = vld [vmem:[%s3 + $0x10] sm:$0xff]
    %v173 = vld [vmem:[%s4] sm:$0x1]
    %v175 = vperm.slane %v173, 0
    %vm177 = vcmask 195584
    %v179 = vsel %vm177, %v169, 0
    %181 = vmatpush.msra.mxu0 0.0
    %182 = vmatpush.msra.mxu0 0.0
    %183 = vmatpush.msra.mxu0 0.0
    %184 = vmatpush.msra.mxu0 0.0
    %185 = vmatpush.msra.mxu0 0.0
    %186 = vmatpush.msra.mxu0 0.0
    %187 = vmatpush.msra.mxu0 0.0
    %188 = vmatpush.msra.mxu0 0.0
    %189 = vmatpush.msra.mxu0 0.0
    %190 = vmatpush.msra.mxu0 0.0
    %191 = vmatpush.msra.mxu0 0.0
    %192 = vmatpush.msra.mxu0 0.0
    %193 = vmatpush.msra.mxu0 0.0
    %194 = vmatpush.msra.mxu0 %v172
    %195 = vmatpush.msra.mxu0 %v171
    %196 = vmatpush.msra.mxu0 %v170
    %197 = vmatmul.f32.gmra.mxu0 %v179
    %v198 = vpop.f32.mrf.mxu0
    %v199 = vadd.f32 %v175, %v198
    %200 = vdwg.mxu0
    %v201 = vld [vmem:[#allocation5] sm:$0xff]
    %v202 = vld [vmem:[#allocation8] sm:$0xff]
    %v203 = vld [vmem:[#allocation8 + $0x8] sm:$0xff]
    %v204 = vld [vmem:[#allocation8 + $0x10] sm:$0xff]
    %v205 = vld [vmem:[#allocation8 + $0x18] sm:$0xff]
    %vm206 = vcmask 261120
    %v208 = vsel %vm206, %v201, 0
    %210 = vmatpush.msra.mxu0 0.0
    %211 = vmatpush.msra.mxu0 0.0
    %212 = vmatpush.msra.mxu0 0.0
    %213 = vmatpush.msra.mxu0 0.0
    %214 = vmatpush.msra.mxu0 0.0
    %215 = vmatpush.msra.mxu0 0.0
    %216 = vmatpush.msra.mxu0 0.0
    %217 = vmatpush.msra.mxu0 0.0
    %218 = vmatpush.msra.mxu0 0.0
    %219 = vmatpush.msra.mxu0 0.0
    %220 = vmatpush.msra.mxu0 0.0
    %221 = vmatpush.msra.mxu0 0.0
    %222 = vmatpush.msra.mxu0 %v205
    %223 = vmatpush.msra.mxu0 %v204
    %224 = vmatpush.msra.mxu0 %v203
    %225 = vmatpush.msra.mxu0 %v202
    %226 = vmatmul.f32.gmra.mxu0 %v208
    %v227 = vpop.f32.mrf.mxu0
    %v228 = vadd.f32 0.0, %v227
    %229 = vdwg.mxu0
    %v230 = vadd.f32 %v147, %v228
    %v231 = vxor.u32 %v230, 2147483648
    %v232 = vmul.f32 %v231, 1.442695
    %v233 = vpow.pop %v232
    %v234 = vadd.f32 %v233, 1.0
    %v235 = vrcp.pop %v234
    %v236 = vmul.f32 %v234, %v235
    %v237 = vsub.f32 1.0, %v236
    %v238 = vmul.f32 %v235, %v237
    %v239 = vadd.f32 %v235, %v238
    %vm240 = vweird.f32 %v234
    %vm241 = vweird.f32 %v235
    %vm242 = vmor %vm240, %vm241
    %v243 = vsel %vm242, %v235, %v239
    %v244 = vand.u32 2147483647, %v234
    %vm245 = vcmp.eq.f32.partialorder %v244, 8.507059e+37
    %v246 = vand.u32 %v234, 2147483648
    %v247 = vor.u32 1.1754944e-38, %v246
    %v248 = vsel %vm245, %v247, %v243
    %v249 = vmul.f32 1.0, %v248
    %v250 = vtanh.pop %v230
    %252 = vrot.lane.b32.xlu0 %v199, 32
    %v253 = vpop.permute.xlu0 %252
    %v255 = vmul.f32 %v249, %v253
    %257 = vrot.lane.b32.xlu0 %v250, 64
    %v258 = vpop.permute.xlu0 %257
    %v260 = vmul.f32 %v249, %v258
    %262 = vrot.lane.b32.xlu0 %v260, 32
    %v263 = vpop.permute.xlu0 %262
    %v265 = vadd.f32 %v255, %v263
    %v266 = vtanh.pop %v265
    %268 = vrot.lane.b32.xlu0 %v266, 64
    %v269 = vpop.permute.xlu0 %268
    %v271 = vmul.f32 %v249, %v269
    %v272 = vld [vmem:[#allocation10] sm:$0xff]
    %v273 = vld [vmem:[#allocation10 + $0x8] sm:$0xff]
    %v274 = vld [vmem:[#allocation10 + $0x10] sm:$0xff]
    %v275 = vld [vmem:[#allocation10 + $0x18] sm:$0xff]
    %277 = vrot.lane.b32.xlu0 %v271, 32
    %v278 = vpop.permute.xlu0 %277
    %v279 = vsel %vm206, %v278, 0
    %281 = vmatpush.msra.mxu0 0.0
    %282 = vmatpush.msra.mxu0 0.0
    %283 = vmatpush.msra.mxu0 0.0
    %284 = vmatpush.msra.mxu0 0.0
    %285 = vmatpush.msra.mxu0 0.0
    %286 = vmatpush.msra.mxu0 0.0
    %287 = vmatpush.msra.mxu0 0.0
    %288 = vmatpush.msra.mxu0 0.0
    %289 = vmatpush.msra.mxu0 0.0
    %290 = vmatpush.msra.mxu0 0.0
    %291 = vmatpush.msra.mxu0 0.0
    %292 = vmatpush.msra.mxu0 0.0
    %293 = vmatpush.msra.mxu0 %v275
    %294 = vmatpush.msra.mxu0 %v274
    %295 = vmatpush.msra.mxu0 %v273
    %296 = vmatpush.msra.mxu0 %v272
    %297 = vmatmul.f32.gmra.mxu0 %v279
    %v298 = vpop.f32.mrf.mxu0
    %v299 = vadd.f32 0.0, %v298
    %300 = vdwg.mxu0
    %v301 = vadd.f32 %v167, %v299
    %v302 = vxor.u32 %v301, 2147483648
    %v303 = vmul.f32 %v302, 1.442695
    %v304 = vpow.pop %v303
    %v305 = vadd.f32 %v304, 1.0
    %v306 = vrcp.pop %v305
    %v307 = vmul.f32 %v305, %v306
    %v308 = vsub.f32 1.0, %v307
    %v309 = vmul.f32 %v306, %v308
    %v310 = vadd.f32 %v306, %v309
    %vm311 = vweird.f32 %v305
    %vm312 = vweird.f32 %v306
    %vm313 = vmor %vm311, %vm312
    %v314 = vsel %vm313, %v306, %v310
    %v315 = vand.u32 2147483647, %v305
    %vm316 = vcmp.eq.f32.partialorder %v315, 8.507059e+37
    %v317 = vand.u32 %v305, 2147483648
    %v318 = vor.u32 1.1754944e-38, %v317
    %v319 = vsel %vm316, %v318, %v314
    %v320 = vmul.f32 1.0, %v319
    %v321 = vtanh.pop %v301
    %v322 = vmul.f32 %v320, %v265
    %324 = vrot.lane.b32.xlu0 %v321, 64
    %v325 = vpop.permute.xlu0 %324
    %v327 = vmul.f32 %v320, %v325
    %329 = vrot.lane.b32.xlu0 %v327, 32
    %v330 = vpop.permute.xlu0 %329
    %v332 = vadd.f32 %v322, %v330
    %v333 = vtanh.pop %v332
    %335 = vrot.lane.b32.xlu0 %v333, 64
    %v336 = vpop.permute.xlu0 %335
    %v338 = vmul.f32 %v320, %v336
    %v339 = vld [vmem:[%s9] sm:$0xff]
    %v340 = vld [vmem:[%s9 + $0x8] sm:$0xff]
    %v341 = vld [vmem:[%s9 + $0x10] sm:$0xff]
    %v342 = vld [vmem:[%s9 + $0x18] sm:$0xff]
    %v343 = vld [vmem:[%s10] sm:$0x1]
    %v345 = vperm.slane %v343, 0
    %348 = vrot.lane.b32.xlu0 %v332, 96
    %v349 = vpop.permute.xlu0 %348
    %v350 = vsel %vm206, %v349, 0
    %352 = vmatpush.msra.mxu0 0.0
    %353 = vmatpush.msra.mxu0 0.0
    %354 = vmatpush.msra.mxu0 0.0
    %355 = vmatpush.msra.mxu0 0.0
    %356 = vmatpush.msra.mxu0 0.0
    %357 = vmatpush.msra.mxu0 0.0
    %358 = vmatpush.msra.mxu0 0.0
    %359 = vmatpush.msra.mxu0 0.0
    %360 = vmatpush.msra.mxu0 0.0
    %361 = vmatpush.msra.mxu0 0.0
    %362 = vmatpush.msra.mxu0 0.0
    %363 = vmatpush.msra.mxu0 0.0
    %364 = vmatpush.msra.mxu0 %v342
    %365 = vmatpush.msra.mxu0 %v341
    %366 = vmatpush.msra.mxu0 %v340
    %367 = vmatpush.msra.mxu0 %v339
    %368 = vmatmul.f32.gmra.mxu0 %v350
    %v369 = vpop.f32.mrf.mxu0
    %v370 = vadd.f32 %v345, %v369
    %371 = vdwg.mxu0
    %v372 = vsel %vm177, %v370, -inf
    %373 = vmax.xlane.f32.xlu0 %v372
    %v374 = vpop.xlane.xlu0 %373
    %v375 = vsub.f32 %v370, %v374
    %v376 = vmul.f32 %v375, 1.442695
    %v377 = vpow.pop %v376
    %v378 = vsel %vm177, %v377, 0.0
    %379 = vadd.xlane.f32.xlu0 %v378
    %v380 = vpop.xlane.xlu0 %379
    %v381 = vlog2.pop %v380
    %v382 = vmul.f32 %v381, 0.6931472
    %v383 = vadd.f32 %v382, %v374
    %v384 = vsub.f32 %v370, %v383
    %385 = vst.msk [vmem:[#allocation11] sm:$0xff] %vm177, %v384
    %387 = vrot.lane.b32.xlu0 %v338, 32
    %v388 = vpop.permute.xlu0 %387
    %390 = vst.msk [vmem:[#allocation12] sm:$0xff] %vm206, %v388
    // Predicated region
    $region66: #{tpu_custom_call.1} parent=1 // pred_check
      _
    $region67: #{tpu_custom_call.1} parent=1 // pred_check_branch
      %392 = sbr.rel (0) target = $region69
    $region68: #{tpu_custom_call.1} parent=1 // pred_region
      %394 = vsyncadd [#allocation4], 0
      %s396 = sshll.u32 [#allocation11], 4
      %s397 = int_to_ptr.vmem [resolvable:$true] %s396
      %s398 = sshll.u32 %s11, 4
      %s399 = int_to_ptr.hbm [resolvable:$true] %s398
      %401 = dma.vmem_to_hbm [thread:$0]  %s397, 128, %s399, [#allocation4]
    $region69: #{tpu_custom_call.1} parent=1 // pred_fallthru
      _
    // Predicated region
    $region70: #{tpu_custom_call.1} parent=1 // pred_check
      _
    $region71: #{tpu_custom_call.1} parent=1 // pred_check_branch
      %403 = sbr.rel (0) target = $region73
    $region72: #{tpu_custom_call.1} parent=1 // pred_region
      %405 = vsyncadd [#allocation13], 0
      %s407 = sshll.u32 [#allocation12], 4
      %s408 = int_to_ptr.vmem [resolvable:$true] %s407
      %s409 = sshll.u32 %s12, 4
      %s410 = int_to_ptr.hbm [resolvable:$true] %s409
      %412 = dma.vmem_to_hbm [thread:$0]  %s408, 128, %s410, [#allocation13]
    $region73: #{tpu_custom_call.1} parent=1 // pred_fallthru
      _
    // Predicated region
    $region74: #{tpu_custom_call.1} parent=1 // pred_check
      _
    $region75: #{tpu_custom_call.1} parent=1 // pred_check_branch
      %414 = sbr.rel (0) target = $region77
    $region76: #{tpu_custom_call.1} parent=1 // pred_region
      %416 = dma.done [#allocation4], 128
    $region77: #{tpu_custom_call.1} parent=1 // pred_fallthru
      _
    // Predicated region
    $region78: #{tpu_custom_call.1} parent=1 // pred_check
      _
    $region79: #{tpu_custom_call.1} parent=1 // pred_check_branch
      %418 = sbr.rel (0) target = $region81
    $region80: #{tpu_custom_call.1} parent=1 // pred_region
      %420 = dma.done [#allocation13], 128
    $region81: #{tpu_custom_call.1} parent=1 // pred_fallthru
      _
    %421 = vsyncpa [#allocation3], 1
    %422 = vsyncpa [#allocation6], 1
    %423 = vsyncpa [#allocation9], 1
    %424 = vsyncpa [#allocation4], 1
    %425 = vsyncpa [#allocation13], 1

</llo_original>
